<compile_context>
chip_gen: v7x
topology: tpu7x:2x2x1
jax: 0.10.0
libtpu: 0.0.40
codegen_flags: <defaults>
</compile_context>

<pallas_src>
import functools

import jax
import jax.numpy as jnp
from jax.experimental import pallas as pl
from jax.experimental.pallas import tpu as pltpu


# ----------------------------------------------------------------------------
# helpers
# ----------------------------------------------------------------------------
def _device_defaults():
    """Per-generation tile sizes and VMEM limit."""
    kind = ""
    try:
        kind = jax.devices()[0].device_kind.lower()
    except Exception:
        pass
    if any(tag in kind for tag in ("v4", "v5", "v6")):      # 128 MiB VMEM / core
        return dict(block_h=2048, block_v=2048, vmem_limit=100 * 1024 * 1024)
    if "v7" in kind or "tpu7" in kind:                       # 64 MiB VMEM / core
        return dict(block_h=1024, block_v=1024, vmem_limit=56 * 1024 * 1024)
    # unknown -> conservative tiles, compiler-default VMEM limit
    return dict(block_h=1024, block_v=1024, vmem_limit=None)


def _largest_tile(dim, target):
    """Largest multiple of 128 that divides `dim` and is <= target."""
    t = min(dim, max(128, target))
    t -= t % 128
    while dim % t:
        t -= 128
    return t


def _quantize_wout_int8(w_out):
    """Per-output-channel symmetric int8 quantization of W_out [H_in -> V]."""
    w = w_out.astype(jnp.float32)
    absmax = jnp.max(jnp.abs(w), axis=1, keepdims=True)           # (nh, 1, V)
    scale = jnp.maximum(absmax, 1e-6) / 127.0
    q = jnp.clip(jnp.round(w / scale), -127.0, 127.0).astype(jnp.int8)
    return q, scale


# ----------------------------------------------------------------------------
# phase 1: ResBlock stack   h = x; h = h + SiLU(h @ W_l + b_l)  (per head)
# grid = (num_heads, num_layers, num_h_tiles)   -- W_res streamed per H-subtile
# ----------------------------------------------------------------------------
def _resblock_kernel(x_ref, w_ref, b_ref, h_out_ref, h_sc, y_acc,
                     *, num_layers, num_h_tiles, block_h):
    l = pl.program_id(1)
    t = pl.program_id(2)

    @pl.when((l == 0) & (t == 0))
    def _init():
        # hidden state kept in f32, stored as H-subtiles (static lane slices)
        for tp in range(num_h_tiles):
            h_sc[tp] = x_ref[:, tp * block_h:(tp + 1) * block_h].astype(jnp.float32)

    @pl.when(t == 0)
    def _zero():
        y_acc[...] = jnp.zeros_like(y_acc)

    # contraction-dim tile:  y += h[:, t_block] @ W[t_block, :]
    h_tile = h_sc[t].astype(jnp.bfloat16)                     # (B, block_h)
    w_tile = w_ref[0, 0]                                       # (block_h, H) bf16
    y_acc[...] += jnp.dot(h_tile, w_tile, preferred_element_type=jnp.float32)

    @pl.when(t == num_h_tiles - 1)
    def _finish_layer():
        y = y_acc[...] + b_ref[0, 0]                           # (B, H) f32
        s = y * jax.nn.sigmoid(y)                              # SiLU(linear(h))
        for tp in range(num_h_tiles):
            h_sc[tp] = h_sc[tp] + s[:, tp * block_h:(tp + 1) * block_h]

    @pl.when((t == num_h_tiles - 1) & (l == num_layers - 1))
    def _emit():
        # emit the per-head hidden state once, in bf16, for the projection phase
        for tp in range(num_h_tiles):
            h_out_ref[0, :, tp * block_h:(tp + 1) * block_h] = (
                h_sc[tp].astype(h_out_ref.dtype))


# ----------------------------------------------------------------------------
# phase 2: out-projection   logits[:, hd, vt_block] = h[hd] @ W_out_tile
# grid = (num_v_tiles, num_heads): V tiles "parallel" (megacore), heads inner.
# Output block covers all heads for one V tile -> logits written directly in
# [B, NUM_HEADS, V] layout, one lane-dense slab per step.
# ----------------------------------------------------------------------------
def _project_kernel(h_ref, w_ref, s_ref, o_ref, *, num_heads):
    hd = pl.program_id(1)
    h = h_ref[hd]                                              # (B, H) bf16
    w = w_ref[0, 0]                                            # (H, block_v) int8/bf16
    acc = jnp.dot(h, w.astype(jnp.bfloat16),
                  preferred_element_type=jnp.float32)          # (B, block_v) f32
    logits = (acc * s_ref[0, 0]).astype(o_ref.dtype)           # per-channel dequant

    for i in range(num_heads):                                 # static head index
        @pl.when(hd == i)
        def _store(i=i):
            o_ref[:, i, :] = logits


# ----------------------------------------------------------------------------
# wrapper
# ----------------------------------------------------------------------------
def medusa_forward(x, w_res, b_res, w_out, *, block_h=None, block_v=None,
                   quantize_out=False, vmem_limit_bytes=None):
    """x: [B, H] -> speculative logits [B, NUM_HEADS, V]."""
    num_heads, num_layers, H, H2 = w_res.shape
    assert H == H2 and num_layers >= 1
    V = w_out.shape[-1]
    B = x.shape[0]
    assert x.shape == (B, H) and w_out.shape == (num_heads, H, V)
    assert H % 128 == 0, "hidden size must be a multiple of 128"
    assert V % 128 == 0, "vocab size must be a multiple of 128"

    defaults = _device_defaults()
    block_h = _largest_tile(H, defaults["block_h"] if block_h is None else block_h)
    block_v = _largest_tile(V, defaults["block_v"] if block_v is None else block_v)
    if vmem_limit_bytes is None:
        vmem_limit_bytes = defaults["vmem_limit"]
    num_h_tiles = H // block_h
    num_v_tiles = V // block_v
    out_dtype = x.dtype

    # pad batch to the f32 sublane multiple (decode batches are often 1)
    b_pad = -(-B // 8) * 8
    if b_pad != B:
        x = jnp.pad(x, ((0, b_pad - B), (0, 0)))

    w_res_bf16 = w_res.astype(jnp.bfloat16)
    b_res4 = b_res.astype(jnp.float32).reshape(num_heads, num_layers, 1, H)

    # ---------------- phase 1: ResBlock stack -> per-head hidden state -------
    resblock = pl.pallas_call(
        functools.partial(_resblock_kernel, num_layers=num_layers,
                          num_h_tiles=num_h_tiles, block_h=block_h),
        out_shape=jax.ShapeDtypeStruct((num_heads, b_pad, H), jnp.bfloat16),
        grid_spec=pltpu.PrefetchScalarGridSpec(
            num_scalar_prefetch=0,
            grid=(num_heads, num_layers, num_h_tiles),
            in_specs=[
                pl.BlockSpec((b_pad, H), lambda hd, l, t: (0, 0)),
                # contraction-dim sub-tile of W_res: contiguous HBM region
                pl.BlockSpec((1, 1, block_h, H), lambda hd, l, t: (hd, l, t, 0)),
                pl.BlockSpec((1, 1, 1, H), lambda hd, l, t: (hd, l, 0, 0)),
            ],
            out_specs=pl.BlockSpec((1, b_pad, H), lambda hd, l, t: (hd, 0, 0)),
            scratch_shapes=[
                pltpu.VMEM((num_h_tiles, b_pad, block_h), jnp.float32),  # h tiles
                pltpu.VMEM((b_pad, H), jnp.float32),                     # y accum
            ],
        ),
        compiler_params=pltpu.CompilerParams(
            dimension_semantics=("parallel", "arbitrary", "arbitrary"),
            vmem_limit_bytes=vmem_limit_bytes,
        ),
    )
    h = resblock(x, w_res_bf16, b_res4)          # (num_heads, b_pad, H) bf16

    # ---------------- phase 2: out-projection, one V tile per step -----------
    # tile-major weight layout: each (H, block_v) block is contiguous in HBM.
    if quantize_out:
        q, scale = _quantize_wout_int8(w_out)
        w_tiles = q.reshape(num_heads, H, num_v_tiles, block_v).transpose(0, 2, 1, 3)
        s_tiles = scale.reshape(num_heads, 1, num_v_tiles, block_v).transpose(0, 2, 1, 3)
    else:
        w_tiles = (w_out.astype(jnp.bfloat16)
                   .reshape(num_heads, H, num_v_tiles, block_v).transpose(0, 2, 1, 3))
        s_tiles = jnp.ones((num_heads, num_v_tiles, 1, block_v), jnp.float32)

    project = pl.pallas_call(
        functools.partial(_project_kernel, num_heads=num_heads),
        out_shape=jax.ShapeDtypeStruct((b_pad, num_heads, V), out_dtype),
        grid_spec=pltpu.PrefetchScalarGridSpec(
            num_scalar_prefetch=0,
            grid=(num_v_tiles, num_heads),
            in_specs=[
                pl.BlockSpec((num_heads, b_pad, H), lambda vt, hd: (0, 0, 0)),
                pl.BlockSpec((1, 1, H, block_v), lambda vt, hd: (hd, vt, 0, 0)),
                pl.BlockSpec((1, 1, 1, block_v), lambda vt, hd: (hd, vt, 0, 0)),
            ],
            out_specs=pl.BlockSpec((b_pad, num_heads, block_v),
                                   lambda vt, hd: (0, 0, vt)),
        ),
        compiler_params=pltpu.CompilerParams(
            dimension_semantics=("parallel", "arbitrary"),
            vmem_limit_bytes=vmem_limit_bytes,
        ),
    )
    logits = project(h, w_tiles, s_tiles)        # (b_pad, num_heads, V)

    return logits[:B] if b_pad != B else logits


# ----------------------------------------------------------------------------
# pure-JAX f32 reference of MedusaModel.forward
# ----------------------------------------------------------------------------
def medusa_reference(x, w_res, b_res, w_out):
    xf = x.astype(jnp.float32)
    heads = []
    for hd in range(w_res.shape[0]):
        h = xf
        for l in range(w_res.shape[1]):
            y = h @ w_res[hd, l].astype(jnp.float32) \
                + b_res[hd, l].astype(jnp.float32)[None, :]
            h = h + y * jax.nn.sigmoid(y)
        heads.append(h @ w_out[hd].astype(jnp.float32))
    return jnp.stack(heads, axis=1)


if __name__ == "__main__":
    # Small shapes implied by the module: speculate=3 heads, 2 ResBlock layers.
    # H=256 / block_h=128 and V=512 / block_v=256 exercise both tiling loops;
    # B=4 exercises the batch-padding path.
    B, H, V = 4, 256, 512
    NUM_HEADS, NUM_LAYERS = 3, 2

    key = jax.random.PRNGKey(0)
    kx, kw, kb, ko = jax.random.split(key, 4)
    x = jax.random.normal(kx, (B, H), dtype=jnp.float32)
    w_res = 0.05 * jax.random.normal(kw, (NUM_HEADS, NUM_LAYERS, H, H), dtype=jnp.float32)
    b_res = 0.05 * jax.random.normal(kb, (NUM_HEADS, NUM_LAYERS, H), dtype=jnp.float32)
    w_out = 0.05 * jax.random.normal(ko, (NUM_HEADS, H, V), dtype=jnp.float32)

    # bf16 W_out path
    out = medusa_forward(x, w_res, b_res, w_out,
                         block_h=128, block_v=256, quantize_out=False)
    out = jax.block_until_ready(out)
    assert out.shape == (B, NUM_HEADS, V), out.shape
    ref = medusa_reference(x, w_res.astype(jnp.bfloat16), b_res,
                           w_out.astype(jnp.bfloat16))
    assert jnp.allclose(out.astype(jnp.float32), ref, atol=3e-2, rtol=3e-2), \
        "bf16 path mismatch vs reference"

    # int8 W_out path (compare against the dequantized weights, i.e. exclude
    # the intentional quantization error from the numerical check)
    out_q = medusa_forward(x, w_res, b_res, w_out,
                           block_h=128, block_v=256, quantize_out=True)
    out_q = jax.block_until_ready(out_q)
    q, scale = _quantize_wout_int8(w_out)
    ref_q = medusa_reference(x, w_res.astype(jnp.bfloat16), b_res,
                             q.astype(jnp.float32) * scale)
    assert jnp.allclose(out_q.astype(jnp.float32), ref_q, atol=3e-2, rtol=3e-2), \
        "int8 path mismatch vs reference"

    print("KERNEL_OK")
</pallas_src>

<mosaic_0001>
module attributes {stable_mosaic.version = 11 : i64} {
  func.func @_resblock_kernel(%arg0: i32, %arg1: i32, %arg2: i32, %arg3: memref<8x256xf32, #tpu.memory_space<vmem>>, %arg4: memref<1x1x128x256xbf16, #tpu.memory_space<vmem>>, %arg5: memref<1x1x1x256xf32, #tpu.memory_space<vmem>>, %arg6: memref<1x8x256xbf16, #tpu.memory_space<vmem>>, %arg7: memref<2x8x128xf32, #tpu.memory_space<vmem>>, %arg8: memref<8x256xf32, #tpu.memory_space<vmem>>) attributes {dimension_semantics = [#tpu.dimension_semantics<parallel>, #tpu.dimension_semantics<arbitrary>, #tpu.dimension_semantics<arbitrary>], iteration_bounds = array<i64: 3, 2, 2>, scalar_prefetch = 0 : i64, scratch_operands = 2 : i64, tpu.core_type = #tpu.core_type<tc>, window_params = [{pipeline_mode = #tpu.pipeline_mode<synchronous>, transform_indices = @transform_0, window_bounds = array<i64: 8, 256>}, {transform_indices = @transform_1, window_bounds = array<i64: 1, 1, 128, 256>}, {transform_indices = @transform_2, window_bounds = array<i64: 1, 1, 1, 256>}, {transform_indices = @transform_3, window_bounds = array<i64: 1, 8, 256>}]} {
    %c0_i32 = arith.constant 0 : i32
    %0 = arith.cmpi eq, %arg1, %c0_i32 : i32
    %c0_i32_0 = arith.constant 0 : i32
    %1 = arith.cmpi eq, %arg2, %c0_i32_0 : i32
    %2 = arith.andi %0, %1 : i1
    %3 = arith.extui %2 : i1 to i32
    %c0_i32_1 = arith.constant 0 : i32
    %4 = arith.cmpi ne, %3, %c0_i32_1 : i32
    scf.if %4 {
      %c0_17 = arith.constant 0 : index
      %c0_18 = arith.constant 0 : index
      %26 = vector.load %arg3[%c0_17, %c0_18] : memref<8x256xf32, #tpu.memory_space<vmem>>, vector<8x128xf32>
      %c0_19 = arith.constant 0 : index
      %c0_20 = arith.constant 0 : index
      %c0_21 = arith.constant 0 : index
      %27 = vector.load %arg7[%c0_19, %c0_20, %c0_21] : memref<2x8x128xf32, #tpu.memory_space<vmem>>, vector<1x8x128xf32>
      %28 = vector.shape_cast %27 : vector<1x8x128xf32> to vector<8x128xf32>
      %29 = vector.shape_cast %26 : vector<8x128xf32> to vector<1x8x128xf32>
      tpu.vector_store %arg7[%c0_19, %c0_20, %c0_21], %29 {strides = array<i32>} : memref<2x8x128xf32, #tpu.memory_space<vmem>>, vector<1x8x128xf32>,
      %c0_22 = arith.constant 0 : index
      %c128 = arith.constant 128 : index
      %30 = vector.load %arg3[%c0_22, %c128] : memref<8x256xf32, #tpu.memory_space<vmem>>, vector<8x128xf32>
      %c1 = arith.constant 1 : index
      %c0_23 = arith.constant 0 : index
      %c0_24 = arith.constant 0 : index
      %31 = vector.load %arg7[%c1, %c0_23, %c0_24] : memref<2x8x128xf32, #tpu.memory_space<vmem>>, vector<1x8x128xf32>
      %32 = vector.shape_cast %31 : vector<1x8x128xf32> to vector<8x128xf32>
      %33 = vector.shape_cast %30 : vector<8x128xf32> to vector<1x8x128xf32>
      tpu.vector_store %arg7[%c1, %c0_23, %c0_24], %33 {strides = array<i32>} : memref<2x8x128xf32, #tpu.memory_space<vmem>>, vector<1x8x128xf32>,
    } else {
    }
    %c0_i32_2 = arith.constant 0 : i32
    %5 = arith.cmpi eq, %arg2, %c0_i32_2 : i32
    %6 = arith.extui %5 : i1 to i32
    %c0_i32_3 = arith.constant 0 : i32
    %7 = arith.cmpi ne, %6, %c0_i32_3 : i32
    scf.if %7 {
      %cst_17 = arith.constant 0.000000e+00 : f32
      %26 = vector.broadcast %cst_17 : f32 to vector<8x256xf32>
      %c0_18 = arith.constant 0 : index
      %c0_19 = arith.constant 0 : index
      %27 = vector.load %arg8[%c0_18, %c0_19] : memref<8x256xf32, #tpu.memory_space<vmem>>, vector<8x256xf32>
      tpu.vector_store %arg8[%c0_18, %c0_19], %26 {strides = array<i32>} : memref<8x256xf32, #tpu.memory_space<vmem>>, vector<8x256xf32>,
    } else {
    }
    %8 = arith.index_cast %arg2 : i32 to index
    %c0 = arith.constant 0 : index
    %c0_4 = arith.constant 0 : index
    %9 = vector.load %arg7[%8, %c0, %c0_4] : memref<2x8x128xf32, #tpu.memory_space<vmem>>, vector<1x8x128xf32>
    %10 = vector.shape_cast %9 : vector<1x8x128xf32> to vector<8x128xf32>
    %11 = arith.truncf %10 : vector<8x128xf32> to vector<8x128xbf16>
    %c0_5 = arith.constant 0 : index
    %c0_6 = arith.constant 0 : index
    %c0_7 = arith.constant 0 : index
    %c0_8 = arith.constant 0 : index
    %12 = vector.load %arg4[%c0_5, %c0_6, %c0_7, %c0_8] : memref<1x1x128x256xbf16, #tpu.memory_space<vmem>>, vector<1x1x128x256xbf16>
    %13 = vector.shape_cast %12 : vector<1x1x128x256xbf16> to vector<128x256xbf16>
    %c0_9 = arith.constant 0 : index
    %c0_10 = arith.constant 0 : index
    %14 = vector.load %arg8[%c0_9, %c0_10] : memref<8x256xf32, #tpu.memory_space<vmem>>, vector<8x256xf32>
    %cst = arith.constant dense<0.000000e+00> : vector<8x256xf32>
    %15 = tpu.matmul %11, %13, %cst {dimension_numbers = #tpu.dot_dimension_numbers<[1], [0], [0], [1], [0, 0, 1, 1], [], []>} : vector<8x128xbf16>, vector<128x256xbf16>, vector<8x256xf32> -> vector<8x256xf32>
    %16 = arith.addf %14, %15 : vector<8x256xf32>
    %c0_11 = arith.constant 0 : index
    %c0_12 = arith.constant 0 : index
    %17 = vector.load %arg8[%c0_11, %c0_12] : memref<8x256xf32, #tpu.memory_space<vmem>>, vector<8x256xf32>
    tpu.vector_store %arg8[%c0_11, %c0_12], %16 {strides = array<i32>} : memref<8x256xf32, #tpu.memory_space<vmem>>, vector<8x256xf32>,
    %c1_i32 = arith.constant 1 : i32
    %18 = arith.cmpi eq, %arg2, %c1_i32 : i32
    %19 = arith.extui %18 : i1 to i32
    %c0_i32_13 = arith.constant 0 : i32
    %20 = arith.cmpi ne, %19, %c0_i32_13 : i32
    scf.if %20 {
      %c0_17 = arith.constant 0 : index
      %c0_18 = arith.constant 0 : index
      %26 = vector.load %arg8[%c0_17, %c0_18] : memref<8x256xf32, #tpu.memory_space<vmem>>, vector<8x256xf32>
      %c0_19 = arith.constant 0 : index
      %c0_20 = arith.constant 0 : index
      %c0_21 = arith.constant 0 : index
      %c0_22 = arith.constant 0 : index
      %27 = vector.load %arg5[%c0_19, %c0_20, %c0_21, %c0_22] : memref<1x1x1x256xf32, #tpu.memory_space<vmem>>, vector<1x1x1x256xf32>
      %28 = vector.shape_cast %27 : vector<1x1x1x256xf32> to vector<1x256xf32>
      %29 = vector.broadcast %28 : vector<1x256xf32> to vector<8x256xf32>
      %30 = arith.addf %26, %29 : vector<8x256xf32>
      %31 = arith.negf %30 : vector<8x256xf32>
      %32 = math.exp %31 : vector<8x256xf32>
      %cst_23 = arith.constant 1.000000e+00 : f32
      %33 = vector.broadcast %cst_23 : f32 to vector<8x256xf32>
      %34 = arith.addf %33, %32 : vector<8x256xf32>
      %35 = arith.divf %33, %34 : vector<8x256xf32>
      %36 = arith.mulf %30, %35 : vector<8x256xf32>
      %c0_24 = arith.constant 0 : index
      %c0_25 = arith.constant 0 : index
      %c0_26 = arith.constant 0 : index
      %37 = vector.load %arg7[%c0_24, %c0_25, %c0_26] : memref<2x8x128xf32, #tpu.memory_space<vmem>>, vector<1x8x128xf32>
      %38 = vector.shape_cast %37 : vector<1x8x128xf32> to vector<8x128xf32>
      %39 = vector.extract_strided_slice %36 {offsets = [0, 0], sizes = [8, 128], strides = [1, 1]} : vector<8x256xf32> to vector<8x128xf32>
      %40 = arith.addf %38, %39 : vector<8x128xf32>
      %c0_27 = arith.constant 0 : index
      %c0_28 = arith.constant 0 : index
      %c0_29 = arith.constant 0 : index
      %41 = vector.load %arg7[%c0_27, %c0_28, %c0_29] : memref<2x8x128xf32, #tpu.memory_space<vmem>>, vector<1x8x128xf32>
      %42 = vector.shape_cast %41 : vector<1x8x128xf32> to vector<8x128xf32>
      %43 = vector.shape_cast %40 : vector<8x128xf32> to vector<1x8x128xf32>
      tpu.vector_store %arg7[%c0_27, %c0_28, %c0_29], %43 {strides = array<i32>} : memref<2x8x128xf32, #tpu.memory_space<vmem>>, vector<1x8x128xf32>,
      %c1 = arith.constant 1 : index
      %c0_30 = arith.constant 0 : index
      %c0_31 = arith.constant 0 : index
      %44 = vector.load %arg7[%c1, %c0_30, %c0_31] : memref<2x8x128xf32, #tpu.memory_space<vmem>>, vector<1x8x128xf32>
      %45 = vector.shape_cast %44 : vector<1x8x128xf32> to vector<8x128xf32>
      %46 = vector.extract_strided_slice %36 {offsets = [0, 128], sizes = [8, 128], strides = [1, 1]} : vector<8x256xf32> to vector<8x128xf32>
      %47 = arith.addf %45, %46 : vector<8x128xf32>
      %c1_32 = arith.constant 1 : index
      %c0_33 = arith.constant 0 : index
      %c0_34 = arith.constant 0 : index
      %48 = vector.load %arg7[%c1_32, %c0_33, %c0_34] : memref<2x8x128xf32, #tpu.memory_space<vmem>>, vector<1x8x128xf32>
      %49 = vector.shape_cast %48 : vector<1x8x128xf32> to vector<8x128xf32>
      %50 = vector.shape_cast %47 : vector<8x128xf32> to vector<1x8x128xf32>
      tpu.vector_store %arg7[%c1_32, %c0_33, %c0_34], %50 {strides = array<i32>} : memref<2x8x128xf32, #tpu.memory_space<vmem>>, vector<1x8x128xf32>,
    } else {
    }
    %c1_i32_14 = arith.constant 1 : i32
    %21 = arith.cmpi eq, %arg2, %c1_i32_14 : i32
    %c1_i32_15 = arith.constant 1 : i32
    %22 = arith.cmpi eq, %arg1, %c1_i32_15 : i32
    %23 = arith.andi %21, %22 : i1
    %24 = arith.extui %23 : i1 to i32
    %c0_i32_16 = arith.constant 0 : i32
    %25 = arith.cmpi ne, %24, %c0_i32_16 : i32
    scf.if %25 {
      %c0_17 = arith.constant 0 : index
      %c0_18 = arith.constant 0 : index
      %c0_19 = arith.constant 0 : index
      %26 = vector.load %arg7[%c0_17, %c0_18, %c0_19] : memref<2x8x128xf32, #tpu.memory_space<vmem>>, vector<1x8x128xf32>
      %27 = vector.shape_cast %26 : vector<1x8x128xf32> to vector<8x128xf32>
      %28 = arith.truncf %27 : vector<8x128xf32> to vector<8x128xbf16>
      %c0_20 = arith.constant 0 : index
      %c0_21 = arith.constant 0 : index
      %c0_22 = arith.constant 0 : index
      %29 = vector.load %arg6[%c0_20, %c0_21, %c0_22] : memref<1x8x256xbf16, #tpu.memory_space<vmem>>, vector<1x8x128xbf16>
      %30 = vector.shape_cast %29 : vector<1x8x128xbf16> to vector<8x128xbf16>
      %31 = vector.shape_cast %28 : vector<8x128xbf16> to vector<1x8x128xbf16>
      tpu.vector_store %arg6[%c0_20, %c0_21, %c0_22], %31 {strides = array<i32>} : memref<1x8x256xbf16, #tpu.memory_space<vmem>>, vector<1x8x128xbf16>,
      %c1 = arith.constant 1 : index
      %c0_23 = arith.constant 0 : index
      %c0_24 = arith.constant 0 : index
      %32 = vector.load %arg7[%c1, %c0_23, %c0_24] : memref<2x8x128xf32, #tpu.memory_space<vmem>>, vector<1x8x128xf32>
      %33 = vector.shape_cast %32 : vector<1x8x128xf32> to vector<8x128xf32>
      %34 = arith.truncf %33 : vector<8x128xf32> to vector<8x128xbf16>
      %c0_25 = arith.constant 0 : index
      %c0_26 = arith.constant 0 : index
      %c128 = arith.constant 128 : index
      %35 = vector.load %arg6[%c0_25, %c0_26, %c128] : memref<1x8x256xbf16, #tpu.memory_space<vmem>>, vector<1x8x128xbf16>
      %36 = vector.shape_cast %35 : vector<1x8x128xbf16> to vector<8x128xbf16>
      %37 = vector.shape_cast %34 : vector<8x128xbf16> to vector<1x8x128xbf16>
      tpu.vector_store %arg6[%c0_25, %c0_26, %c128], %37 {strides = array<i32>} : memref<1x8x256xbf16, #tpu.memory_space<vmem>>, vector<1x8x128xbf16>,
    } else {
    }
    return
  }
  func.func @transform_0(%arg0: i32, %arg1: i32, %arg2: i32) -> (i32, i32) {
    %c0_i32 = arith.constant 0 : i32
    %c0_i32_0 = arith.constant 0 : i32
    %c0_i32_1 = arith.constant 0 : i32
    return %c0_i32, %c0_i32_0 : i32, i32
  }
  func.func @transform_1(%arg0: i32, %arg1: i32, %arg2: i32) -> (i32, i32, i32, i32) {
    %c0_i32 = arith.constant 0 : i32
    %c0_i32_0 = arith.constant 0 : i32
    return %arg0, %arg1, %arg2, %c0_i32 : i32, i32, i32, i32
  }
  func.func @transform_2(%arg0: i32, %arg1: i32, %arg2: i32) -> (i32, i32, i32, i32) {
    %c0_i32 = arith.constant 0 : i32
    %c0_i32_0 = arith.constant 0 : i32
    %c0_i32_1 = arith.constant 0 : i32
    return %arg0, %arg1, %c0_i32, %c0_i32_0 : i32, i32, i32, i32
  }
  func.func @transform_3(%arg0: i32, %arg1: i32, %arg2: i32) -> (i32, i32, i32) {
    %c0_i32 = arith.constant 0 : i32
    %c0_i32_0 = arith.constant 0 : i32
    %c0_i32_1 = arith.constant 0 : i32
    return %arg0, %c0_i32, %c0_i32_0 : i32, i32, i32
  }
}

</mosaic_0001>

<llo_original>
// kernel: tpu_custom_call.1
$region0: #{tpu_custom_call.1}
  #allocation0 [shape = 'u32[]', space=smem, size = 0x4, offset = 0x4, fixed_abs, tag = 'smem constant byte address 0x4 - core index']
  #allocation1 [shape = 'u32[144,128]{1,0:T(1,128)}', space=vmem, size = 0x12000, scoped, tag = 'internal scratch']
  #allocation2 [shape = 'f32[2,8,128]{2,1,0:T(8,128)}', space=vmem, size = 0x2000, scoped, tag = 'scratch operand']
  #allocation3 [shape = 'f32[8,256]{1,0:T(8,128)}', space=vmem, size = 0x2000, scoped, tag = 'scratch operand']
  %s0 = inlined_call_operand.hbm [shape: f32[8,256], index: 0, kind: input, shape index: {}]
  %s1 = inlined_call_operand.hbm [shape: bf16[3,2,256,256], index: 1, kind: input, shape index: {}]
  %s2 = inlined_call_operand.hbm [shape: f32[3,2,1,256], index: 2, kind: input, shape index: {}]
  %s3 = inlined_call_operand.hbm [shape: bf16[3,8,256], index: 3, kind: output, shape index: {}]
  %s4 = sld [smem:[#allocation0]]
  $region73: #{tpu_custom_call.1} parent=0
    _
  %s6 = ssub.s32 1, %s4
  %s7 = scalar_select 0, %s6, %s4
  $region1: #{tpu_custom_call.1} parent=0
    #allocation4 [shape = 'u8[8192]{0}', space=vmem, size = 0x2000, scoped, tag = 'input window, operand 0, single buffered']
    #allocation5 [shape = 's32[2]{0}', space=sflag, size = 0x8, scoped, tag = 'scoped memory for tpu_custom_call.1']
    #allocation6 [shape = 's32[2]{0}', space=sflag, size = 0x8, scoped, tag = 'scoped memory for tpu_custom_call.1']
    #allocation7 [shape = 'u8[131072]{0}', space=vmem, size = 0x20000, scoped, tag = 'input window, operand 1']
    #allocation8 [shape = 's32[2]{0}', space=sflag, size = 0x8, scoped, tag = 'scoped memory for tpu_custom_call.1']
    #allocation9 [shape = 'u8[2048]{0}', space=vmem, size = 0x800, scoped, tag = 'input window, operand 2']
    #allocation10 [shape = 'u8[8192]{0}', space=vmem, size = 0x2000, scoped, tag = 'output window, operand 0']
    %8 = vsyncpa [#allocation5], 0
    %9 = vsyncpa [#allocation8], 0
    %s10 = scalar_lea.sflag [#allocation8], 1
    %11 = vsyncpa %s10, 0
    %12 = vsyncpa [#allocation6], 0
    %s13 = scalar_lea.sflag [#allocation6], 1
    %14 = vsyncpa %s13, 0
    loop: start=0, step=1, limit=14
    $region2: #{tpu_custom_call.1} parent=1 // loop_pre_header
      _
    $region3: #{tpu_custom_call.1} parent=1 // loop_header
      %s16 = sphi 0, %s20
      %p17 = scmp.ge.s32.totalorder %s16, 14
      %s23 = sphi 0, %s42
      %s24 = sphi 0, %s38
      %s25 = sphi 0, %s34
      %s26 = sphi 0, %s23
      %s27 = sphi 0, %s24
      %s28 = sphi 0, %s25
      %s29 = sphi 0, %s26
      %s30 = sphi 0, %s27
      %s31 = sphi 0, %s28
      %s43 = sphi 0, %s43
      %s45 = sphi 0, %s43
      %s46 = sphi 0, %s45
      %s60 = sphi 0, %s46
      %s70 = sphi 0, %s72
      %s73 = sphi 0, %s70
      %s74 = sphi 0, %s73
      %s90 = sphi 0, %s74
      %s98 = sphi 0, %s100
      %s101 = sphi 0, %s98
      %s102 = sphi 0, %s101
      %s118 = sphi 0, %s102
      %s124 = sphi 0, %s126
      %s127 = sphi 0, %s124
      %s128 = sphi 0, %s127
      %s144 = sphi 0, %s128
    $region4: #{tpu_custom_call.1} parent=1 // loop_header_branch
      %19 = sbr.rel (%p17) target = $region8
    $region5: #{tpu_custom_call.1} parent=1 // loop_body
      %s21 = ssub.s32 %s16, 1
      %s22 = ssub.s32 %s16, 2
      %s32 = sadd.s32 1, %s25
      %p33 = scmp.ge.s32.totalorder %s32, 2
      %s34 = scalar_select %p33, 0, %s32
      %s35 = sadd.s32 1, %s24
      %s36 = scalar_select %p33, %s35, %s24
      %p37 = scmp.ge.s32.totalorder %s36, 2
      %s38 = scalar_select %p37, 0, %s36
      %s39 = sadd.s32 1, %s23
      %s40 = scalar_select %p37, %s39, %s23
      %p41 = scmp.ge.s32.totalorder %s40, 3
      %s42 = scalar_select %p41, 0, %s40
      %s44 = sadd.s32 %s43, 1
      %p47 = scmp.eq.s32.totalorder %s16, 11
      %p48 = scmp.ne.s32.totalorder %s43, %s45
      %p49 = scmp.eq.s32.totalorder %s16, 0
      %p50 = por %p48, %p49
      %p51 = scmp.ne.s32.totalorder %s43, %s45
      %p52 = scmp.eq.s32.totalorder %s21, 11
      %p53 = por %p51, %p52
      %p54 = scmp.ne.s32.totalorder %s45, %s46
      %p55 = scmp.eq.s32.totalorder %s21, 0
      %p56 = por %p54, %p55
      %p57 = scmp.ne.s32.totalorder %s45, %s46
      %p58 = scmp.eq.s32.totalorder %s22, 11
      %p59 = por %p57, %p58
      %p61 = scmp.ne.s32.totalorder %s46, %s60
      %p62 = scmp.eq.s32.totalorder %s22, 0
      %p63 = por %p61, %p62
      %s64 = ssub.s32 %s23, %s42
      %s65 = ssub.s32 %s24, %s38
      %s66 = sor.u32 %s64, %s65
      %s67 = ssub.s32 %s25, %s34
      %s68 = sor.u32 %s66, %s67
      %p69 = scmp.eq.s32.totalorder %s68, 0
      %s71 = sadd.s32 %s70, 1
      %s72 = scalar_select %p69, %s70, %s71
      %p75 = pneg %p69
      %p76 = scmp.eq.s32.totalorder %s16, 11
      %p77 = por %p75, %p76
      %p78 = scmp.ne.s32.totalorder %s70, %s73
      %p79 = scmp.eq.s32.totalorder %s16, 0
      %p80 = por %p78, %p79
      %p81 = scmp.ne.s32.totalorder %s70, %s73
      %p82 = scmp.eq.s32.totalorder %s21, 11
      %p83 = por %p81, %p82
      %p84 = scmp.ne.s32.totalorder %s73, %s74
      %p85 = scmp.eq.s32.totalorder %s21, 0
      %p86 = por %p84, %p85
      %p87 = scmp.ne.s32.totalorder %s73, %s74
      %p88 = scmp.eq.s32.totalorder %s22, 11
      %p89 = por %p87, %p88
      %p91 = scmp.ne.s32.totalorder %s74, %s90
      %p92 = scmp.eq.s32.totalorder %s22, 0
      %p93 = por %p91, %p92
      %s94 = ssub.s32 %s23, %s42
      %s95 = ssub.s32 %s24, %s38
      %s96 = sor.u32 %s94, %s95
      %p97 = scmp.eq.s32.totalorder %s96, 0
      %s99 = sadd.s32 %s98, 1
      %s100 = scalar_select %p97, %s98, %s99
      %p103 = pneg %p97
      %p104 = scmp.eq.s32.totalorder %s16, 11
      %p105 = por %p103, %p104
      %p106 = scmp.ne.s32.totalorder %s98, %s101
      %p107 = scmp.eq.s32.totalorder %s16, 0
      %p108 = por %p106, %p107
      %p109 = scmp.ne.s32.totalorder %s98, %s101
      %p110 = scmp.eq.s32.totalorder %s21, 11
      %p111 = por %p109, %p110
      %p112 = scmp.ne.s32.totalorder %s101, %s102
      %p113 = scmp.eq.s32.totalorder %s21, 0
      %p114 = por %p112, %p113
      %p115 = scmp.ne.s32.totalorder %s101, %s102
      %p116 = scmp.eq.s32.totalorder %s22, 11
      %p117 = por %p115, %p116
      %p119 = scmp.ne.s32.totalorder %s102, %s118
      %p120 = scmp.eq.s32.totalorder %s22, 0
      %p121 = por %p119, %p120
      %s122 = ssub.s32 %s23, %s42
      %p123 = scmp.eq.s32.totalorder %s122, 0
      %s125 = sadd.s32 %s124, 1
      %s126 = scalar_select %p123, %s124, %s125
      %p129 = pneg %p123
      %p130 = scmp.eq.s32.totalorder %s16, 11
      %p131 = por %p129, %p130
      %p132 = scmp.ne.s32.totalorder %s124, %s127
      %p133 = scmp.eq.s32.totalorder %s16, 0
      %p134 = por %p132, %p133
      %p135 = scmp.ne.s32.totalorder %s124, %s127
      %p136 = scmp.eq.s32.totalorder %s21, 11
      %p137 = por %p135, %p136
      %p138 = scmp.ne.s32.totalorder %s127, %s128
      %p139 = scmp.eq.s32.totalorder %s21, 0
      %p140 = por %p138, %p139
      %p141 = scmp.ne.s32.totalorder %s127, %s128
      %p142 = scmp.eq.s32.totalorder %s22, 11
      %p143 = por %p141, %p142
      %p145 = scmp.ne.s32.totalorder %s128, %s144
      %p146 = scmp.eq.s32.totalorder %s22, 0
      %p147 = por %p145, %p146
      %p148 = scmp.le.s32.totalorder 1, %s16
      %p149 = scmp.lt.s32.totalorder %s16, 13
      %p150 = pnand %p148, %p149
      %p151 = pneg %p150
      // Predicated region
      $region9: #{tpu_custom_call.1} parent=5 // pred_check
        _
      $region10: #{tpu_custom_call.1} parent=5 // pred_check_branch
        %153 = sbr.rel (%p150) target = $region12
      $region11: #{tpu_custom_call.1} parent=5 // pred_region
        %s154 = ssub.s32 %s16, 1
        // Predicated region
        $region13: #{tpu_custom_call.1} parent=11 // pred_check
          %p155 = pneg %p56
        $region14: #{tpu_custom_call.1} parent=11 // pred_check_branch
          %157 = sbr.rel (%p155) target = $region16
        $region15: #{tpu_custom_call.1} parent=11 // pred_region
          %s159 = ssub.s32 256, 256
          %160 = vsyncadd [#allocation5], %s159
          %s162 = sshll.u32 [#allocation4], 4
          %s163 = int_to_ptr.vmem [resolvable:$true] %s162
          %165 = dma.hbm_to_vmem [thread:$0]  %s0, 256, %s163, [#allocation5]
        $region16: #{tpu_custom_call.1} parent=11 // pred_fallthru
          _
      $region12: #{tpu_custom_call.1} parent=5 // pred_fallthru
        _
      %p166 = scmp.lt.s32.totalorder %s16, 12
      // Predicated region
      $region17: #{tpu_custom_call.1} parent=5 // pred_check
        %p167 = pneg %p166
      $region18: #{tpu_custom_call.1} parent=5 // pred_check_branch
        %169 = sbr.rel (%p167) target = $region20
      $region19: #{tpu_custom_call.1} parent=5 // pred_region
        // Predicated region
        $region21: #{tpu_custom_call.1} parent=19 // pred_check
          %p170 = pneg %p80
        $region22: #{tpu_custom_call.1} parent=19 // pred_check_branch
          %172 = sbr.rel (%p170) target = $region24
        $region23: #{tpu_custom_call.1} parent=19 // pred_region
          %s173 = sand.u32 %s16, 1
          %s174 = scalar_lea.sflag [#allocation8], %s173
          %s175 = sand.u32 %s70, 1
          %s176 = smul.addr %s175, 128
          %s177 = scalar_lea.vmem [#allocation7], %s176
          %s178 = smul.u32 16, %s25
          %s180 = ssub.s32 2048, 2048
          %181 = vsyncadd %s174, %s180
          %s182 = smul.addr %s178, 2
          %s183 = smul.addr %s24, 64
          %s184 = sadd.s32 %s182, %s183
          %s185 = smul.addr %s23, 128
          %s186 = sadd.s32 %s184, %s185
          %s187 = smul.addr %s186, 64
          %s188 = scalar_lea.hbm %s1, %s187
          %s189 = sshll.u32 %s177, 4
          %s190 = int_to_ptr.vmem [resolvable:$true] %s189
          %195 = dma.hbm_to_vmem [thread:$0]  %s188, 2048, %s190, %s174, 128, 128, 8
        $region24: #{tpu_custom_call.1} parent=19 // pred_fallthru
          _
        // Predicated region
        $region25: #{tpu_custom_call.1} parent=19 // pred_check
          %p196 = pneg %p108
        $region26: #{tpu_custom_call.1} parent=19 // pred_check_branch
          %198 = sbr.rel (%p196) target = $region28
        $region27: #{tpu_custom_call.1} parent=19 // pred_region
          %s199 = sand.u32 %s16, 1
          %s200 = scalar_lea.sflag [#allocation8], %s199
          %s201 = sand.u32 %s98, 1
          %s202 = smul.addr %s201, 2
          %s203 = scalar_lea.vmem [#allocation9], %s202
          %s205 = ssub.s32 32, 32
          %206 = vsyncadd %s200, %s205
          %s207 = smul.addr %s24, 2
          %s208 = smul.addr %s23, 4
          %s209 = sadd.s32 %s207, %s208
          %s210 = smul.addr %s209, 16
          %s211 = scalar_lea.hbm %s2, %s210
          %s213 = sshll.u32 %s203, 4
          %s214 = int_to_ptr.vmem [resolvable:$true] %s213
          %216 = dma.hbm_to_vmem [thread:$0]  %s211, 32, %s214, %s200
        $region28: #{tpu_custom_call.1} parent=19 // pred_fallthru
          _
      $region20: #{tpu_custom_call.1} parent=5 // pred_fallthru
        _
      %p217 = scmp.le.s32.totalorder 1, %s16
      %p218 = scmp.lt.s32.totalorder %s16, 13
      %p219 = pnand %p217, %p218
      %p220 = pneg %p219
      // Predicated region
      $region29: #{tpu_custom_call.1} parent=5 // pred_check
        _
      $region30: #{tpu_custom_call.1} parent=5 // pred_check_branch
        %222 = sbr.rel (%p219) target = $region32
      $region31: #{tpu_custom_call.1} parent=5 // pred_region
        %s223 = ssub.s32 %s16, 1
        // Predicated region
        $region33: #{tpu_custom_call.1} parent=31 // pred_check
          %p224 = pneg %p56
        $region34: #{tpu_custom_call.1} parent=31 // pred_check_branch
          %226 = sbr.rel (%p224) target = $region36
        $region35: #{tpu_custom_call.1} parent=31 // pred_region
          %227 = dma.done [#allocation5], 256
        $region36: #{tpu_custom_call.1} parent=31 // pred_fallthru
          _
        %s228 = sand.u32 %s21, 1
        %s229 = scalar_lea.sflag [#allocation8], %s228
        %s230 = sand.u32 %s73, 1
        %s231 = smul.addr %s230, 128
        %s232 = scalar_lea.vmem [#allocation7], %s231
        // Predicated region
        $region37: #{tpu_custom_call.1} parent=31 // pred_check
          %p233 = pneg %p86
        $region38: #{tpu_custom_call.1} parent=31 // pred_check_branch
          %235 = sbr.rel (%p233) target = $region40
        $region39: #{tpu_custom_call.1} parent=31 // pred_region
          %236 = dma.done %s229, 2048
        $region40: #{tpu_custom_call.1} parent=31 // pred_fallthru
          _
        %s237 = sand.u32 %s21, 1
        %s238 = scalar_lea.sflag [#allocation8], %s237
        %s239 = sand.u32 %s101, 1
        %s240 = smul.addr %s239, 2
        %s241 = scalar_lea.vmem [#allocation9], %s240
        // Predicated region
        $region41: #{tpu_custom_call.1} parent=31 // pred_check
          %p242 = pneg %p114
        $region42: #{tpu_custom_call.1} parent=31 // pred_check_branch
          %244 = sbr.rel (%p242) target = $region44
        $region43: #{tpu_custom_call.1} parent=31 // pred_region
          %245 = dma.done %s238, 32
        $region44: #{tpu_custom_call.1} parent=31 // pred_fallthru
          _
        %p246 = pneg %p56
        %p247 = pneg %p53
        %s248 = sand.u32 %s21, 1
        %s249 = scalar_lea.sflag [#allocation8], %s248
        %s250 = sand.u32 %s73, 1
        %s251 = smul.addr %s250, 128
        %s252 = scalar_lea.vmem [#allocation7], %s251
        %p253 = pneg %p86
        %p254 = pneg %p83
        %s255 = sand.u32 %s21, 1
        %s256 = scalar_lea.sflag [#allocation8], %s255
        %s257 = sand.u32 %s101, 1
        %s258 = smul.addr %s257, 2
        %s259 = scalar_lea.vmem [#allocation9], %s258
        %p260 = pneg %p114
        %p261 = pneg %p111
        %p262 = pneg %p140
        %p263 = pneg %p137
        %s264 = sand.u32 %s127, 1
        %s265 = scalar_lea.sflag [#allocation6], %s264
        %s266 = sand.u32 %s127, 1
        %s267 = smul.addr %s266, 8
        %s268 = scalar_lea.vmem [#allocation10], %s267
        %s269 = smul.u32 16, %s28
        %p271 = scmp.eq.s32.totalorder %s27, 0
        %p272 = scmp.eq.s32.totalorder %s28, 0
        %p273 = pnand %p271, %p272
        %p274 = pneg %p273
        // Predicated region
        $region45: #{tpu_custom_call.1} parent=31 // pred_check
          _
        $region46: #{tpu_custom_call.1} parent=31 // pred_check_branch
          %276 = sbr.rel (%p273) target = $region48
        $region47: #{tpu_custom_call.1} parent=31 // pred_region
          %v277 = vld [vmem:[#allocation4] sm:$0xff]
          %278 = vst [vmem:[#allocation2] sm:$0xff] %v277
          %v279 = vld [vmem:[#allocation4 + $0x8] sm:$0xff]
          %s280 = scalar_lea.vmem [#allocation2], 8
          %281 = vst [vmem:[%s280] sm:$0xff] %v279
        $region48: #{tpu_custom_call.1} parent=31 // pred_fallthru
          _
        // Predicated region
        $region49: #{tpu_custom_call.1} parent=31 // pred_check
          %p282 = pneg %p272
        $region50: #{tpu_custom_call.1} parent=31 // pred_check_branch
          %284 = sbr.rel (%p282) target = $region52
        $region51: #{tpu_custom_call.1} parent=31 // pred_region
          %285 = vst [vmem:[#allocation3] sm:$0xff] 0.0
          %286 = vst [vmem:[#allocation3 + $0x8] sm:$0xff] 0.0
        $region52: #{tpu_custom_call.1} parent=31 // pred_fallthru
          _
        %s287 = smul.u32 %s28, 8
        %s288 = scalar_lea.vmem [#allocation2], %s287
        %v289 = vld [vmem:[%s288] sm:$0xff]
        %v290 = vpack.c.bf16 %v289, %v289
        %v291 = vld [vmem:[%s232] sm:$0xff]
        %v292 = vld [vmem:[%s232 + $0x8] sm:$0xff]
        %v293 = vld [vmem:[%s232 + $0x10] sm:$0xff]
        %v294 = vld [vmem:[%s232 + $0x18] sm:$0xff]
        %v295 = vld [vmem:[%s232 + $0x20] sm:$0xff]
        %v296 = vld [vmem:[%s232 + $0x28] sm:$0xff]
        %v297 = vld [vmem:[%s232 + $0x30] sm:$0xff]
        %v298 = vld [vmem:[%s232 + $0x38] sm:$0xff]
        %v299 = vld [vmem:[%s232 + $0x40] sm:$0xff]
        %v300 = vld [vmem:[%s232 + $0x48] sm:$0xff]
        %v301 = vld [vmem:[%s232 + $0x50] sm:$0xff]
        %v302 = vld [vmem:[%s232 + $0x58] sm:$0xff]
        %v303 = vld [vmem:[%s232 + $0x60] sm:$0xff]
        %v304 = vld [vmem:[%s232 + $0x68] sm:$0xff]
        %v305 = vld [vmem:[%s232 + $0x70] sm:$0xff]
        %v306 = vld [vmem:[%s232 + $0x78] sm:$0xff]
        %v307 = vld [vmem:[#allocation3] sm:$0xff]
        %v308 = vld [vmem:[#allocation3 + $0x8] sm:$0xff]
        %v325 = vunpack.c.l.b16 %v291
        %v326 = vunpack.c.h.b16 %v291
        %v327 = vunpack.c.l.b16 %v292
        %v328 = vunpack.c.h.b16 %v292
        %v329 = vunpack.c.l.b16 %v293
        %v330 = vunpack.c.h.b16 %v293
        %v331 = vunpack.c.l.b16 %v294
        %v332 = vunpack.c.h.b16 %v294
        %v333 = vunpack.c.l.b16 %v295
        %v334 = vunpack.c.h.b16 %v295
        %v335 = vunpack.c.l.b16 %v296
        %v336 = vunpack.c.h.b16 %v296
        %v337 = vunpack.c.l.b16 %v297
        %v338 = vunpack.c.h.b16 %v297
        %v339 = vunpack.c.l.b16 %v298
        %v340 = vunpack.c.h.b16 %v298
        %v341 = vunpack.c.l.b16 %v299
        %v342 = vunpack.c.h.b16 %v299
        %v343 = vunpack.c.l.b16 %v300
        %v344 = vunpack.c.h.b16 %v300
        %v345 = vunpack.c.l.b16 %v301
        %v346 = vunpack.c.h.b16 %v301
        %v347 = vunpack.c.l.b16 %v302
        %v348 = vunpack.c.h.b16 %v302
        %v349 = vunpack.c.l.b16 %v303
        %v350 = vunpack.c.h.b16 %v303
        %v351 = vunpack.c.l.b16 %v304
        %v352 = vunpack.c.h.b16 %v304
        %v353 = vunpack.c.l.b16 %v305
        %v354 = vunpack.c.h.b16 %v305
        %v355 = vunpack.c.l.b16 %v306
        %v356 = vunpack.c.h.b16 %v306
        %v357 = vpack.c.b16 %v327, %v325
        %v358 = vpack.c.b16 %v328, %v326
        %v359 = vpack.c.b16 %v331, %v329
        %v360 = vpack.c.b16 %v332, %v330
        %v361 = vpack.c.b16 %v335, %v333
        %v362 = vpack.c.b16 %v336, %v334
        %v363 = vpack.c.b16 %v339, %v337
        %v364 = vpack.c.b16 %v340, %v338
        %v365 = vpack.c.b16 %v343, %v341
        %v366 = vpack.c.b16 %v344, %v342
        %v367 = vpack.c.b16 %v347, %v345
        %v368 = vpack.c.b16 %v348, %v346
        %v369 = vpack.c.b16 %v351, %v349
        %v370 = vpack.c.b16 %v352, %v350
        %v371 = vpack.c.b16 %v355, %v353
        %v372 = vpack.c.b16 %v356, %v354
        %389 = vmatprep.subr.bf16.mxu0 %v358
        %390 = vmatpush1.bf16.msra.mxu0 %v357
        %391 = vmatprep.subr.bf16.mxu0 %v360
        %392 = vmatpush1.bf16.msra.mxu0 %v359
        %393 = vmatprep.subr.bf16.mxu0 %v362
        %394 = vmatpush1.bf16.msra.mxu0 %v361
        %395 = vmatprep.subr.bf16.mxu0 %v364
        %396 = vmatpush1.bf16.msra.mxu0 %v363
        %397 = vmatprep.subr.bf16.mxu0 %v366
        %398 = vmatpush1.bf16.msra.mxu0 %v365
        %399 = vmatprep.subr.bf16.mxu0 %v368
        %400 = vmatpush1.bf16.msra.mxu0 %v367
        %401 = vmatprep.subr.bf16.mxu0 %v370
        %402 = vmatpush1.bf16.msra.mxu0 %v369
        %403 = vmatprep.subr.bf16.mxu0 %v372
        %404 = vmatpush1.bf16.msra.mxu0 %v371
        %405 = vmatprep.subr.bf16.mxu0 0
        %406 = vmatpush1.bf16.msra.mxu0 0
        %407 = vmatprep.subr.bf16.mxu0 0
        %408 = vmatpush1.bf16.msra.mxu0 0
        %409 = vmatprep.subr.bf16.mxu0 0
        %410 = vmatpush1.bf16.msra.mxu0 0
        %411 = vmatprep.subr.bf16.mxu0 0
        %412 = vmatpush1.bf16.msra.mxu0 0
        %413 = vmatprep.subr.bf16.mxu0 0
        %414 = vmatpush1.bf16.msra.mxu0 0
        %415 = vmatprep.subr.bf16.mxu0 0
        %416 = vmatpush1.bf16.msra.mxu0 0
        %417 = vmatprep.subr.bf16.mxu0 0
        %418 = vmatpush1.bf16.msra.mxu0 0
        %419 = vmatprep.subr.bf16.mxu0 0
        %420 = vmatpush1.bf16.msra.mxu0 0
        %421 = vmatprep.mubr.bf16.mxu0 0
        %422 = vmatmul.mubr.bf16.gmra.mrb[0].mxu0 %v290
        %v423 = vpop.f32.mrb[0].mxu0
        %v424 = vadd.f32 0.0, %v423
        %v425 = vpop.f32.mrb[0].mxu0
        %v426 = vadd.f32 0.0, %v425
        %v427 = vpop.f32.mrb[0].mxu0
        %v428 = vpop.f32.mrb[0].mxu0
        %429 = vdwg.mxu0
        %v430 = vadd.f32 %v307, %v424
        %v431 = vadd.f32 %v308, %v426
        %432 = vst [vmem:[#allocation3] sm:$0xff] %v430
        %433 = vst [vmem:[#allocation3 + $0x8] sm:$0xff] %v431
        %p434 = scmp.eq.s32.totalorder %s28, 1
        // Predicated region
        $region53: #{tpu_custom_call.1} parent=31 // pred_check
          %p435 = pneg %p434
        $region54: #{tpu_custom_call.1} parent=31 // pred_check_branch
          %437 = sbr.rel (%p435) target = $region56
        $region55: #{tpu_custom_call.1} parent=31 // pred_region
          %v438 = vld [vmem:[#allocation3] sm:$0xff]
          %v439 = vld [vmem:[#allocation3 + $0x8] sm:$0xff]
          %v440 = vld [vmem:[%s241] sm:$0x3]
          %v442 = vlaneseq
          %v443 = vshrl.u32 %v442, 7
          %v444 = vsub.s32 0, %v443
          %v445 = vrot.slane %v440, %v444
          %v446 = vlaneseq
          %v447 = vshrl.u32 %v446, 7
          %v448 = vsub.s32 1, %v447
          %v449 = vrot.slane %v440, %v448
          %v452 = vadd.f32 %v438, %v445
          %v453 = vadd.f32 %v439, %v449
          %v454 = vxor.u32 %v452, 2147483648
          %v455 = vxor.u32 %v453, 2147483648
          %v456 = vmul.f32 %v454, 1.442695
          %v457 = vpow.pop %v456
          %v458 = vmul.f32 %v455, 1.442695
          %v459 = vpow.pop %v458
          %v460 = vadd.f32 %v457, 1.0
          %v461 = vadd.f32 %v459, 1.0
          %v462 = vrcp.pop %v460
          %v463 = vmul.f32 1.0, %v462
          %v464 = vrcp.pop %v461
          %v465 = vmul.f32 1.0, %v464
          %v466 = vmul.f32 %v452, %v463
          %v467 = vmul.f32 %v453, %v465
          %v468 = vld [vmem:[#allocation2] sm:$0xff]
          %v469 = vadd.f32 %v468, %v466
          %470 = vst [vmem:[#allocation2] sm:$0xff] %v469
          %s471 = scalar_lea.vmem [#allocation2], 8
          %v472 = vld [vmem:[%s471] sm:$0xff]
          %v473 = vadd.f32 %v472, %v467
          %474 = vst [vmem:[%s471] sm:$0xff] %v473
        $region56: #{tpu_custom_call.1} parent=31 // pred_fallthru
          _
        %p475 = scmp.eq.s32.totalorder %s27, 1
        %p476 = pnand %p434, %p475
        %p477 = pneg %p476
        // Predicated region
        $region57: #{tpu_custom_call.1} parent=31 // pred_check
          _
        $region58: #{tpu_custom_call.1} parent=31 // pred_check_branch
          %479 = sbr.rel (%p476) target = $region60
        $region59: #{tpu_custom_call.1} parent=31 // pred_region
          %v480 = vld [vmem:[#allocation2] sm:$0xff]
          %v481 = vpack.c.bf16 %v480, %v480
          %482 = vst [vmem:[%s268] sm:$0xf] %v481
          %s483 = scalar_lea.vmem [#allocation2], 8
          %v484 = vld [vmem:[%s483] sm:$0xff]
          %v485 = vpack.c.bf16 %v484, %v484
          %486 = vst [vmem:[%s268 + $0x4] sm:$0xf] %v485
        $region60: #{tpu_custom_call.1} parent=31 // pred_fallthru
          _
        %s487 = sand.u32 %s127, 1
        %s488 = scalar_lea.sflag [#allocation6], %s487
        %s489 = sand.u32 %s127, 1
        %s490 = smul.addr %s489, 8
        %s491 = scalar_lea.vmem [#allocation10], %s490
        // Predicated region
        $region61: #{tpu_custom_call.1} parent=31 // pred_check
          %p492 = pneg %p137
        $region62: #{tpu_custom_call.1} parent=31 // pred_check_branch
          %494 = sbr.rel (%p492) target = $region64
        $region63: #{tpu_custom_call.1} parent=31 // pred_region
          %s496 = ssub.s32 128, 128
          %497 = vsyncadd %s488, %s496
          %s498 = smul.addr %s26, 2
          %s499 = smul.addr %s498, 64
          %s500 = scalar_lea.hbm %s3, %s499
          %s502 = sshll.u32 %s491, 4
          %s503 = int_to_ptr.vmem [resolvable:$true] %s502
          %505 = dma.vmem_to_hbm [thread:$0]  %s503, 128, %s500, %s488
        $region64: #{tpu_custom_call.1} parent=31 // pred_fallthru
          _
      $region32: #{tpu_custom_call.1} parent=5 // pred_fallthru
        _
      %p506 = scmp.le.s32.totalorder 2, %s16
      // Predicated region
      $region65: #{tpu_custom_call.1} parent=5 // pred_check
        %p507 = pneg %p506
      $region66: #{tpu_custom_call.1} parent=5 // pred_check_branch
        %509 = sbr.rel (%p507) target = $region68
      $region67: #{tpu_custom_call.1} parent=5 // pred_region
        %s510 = ssub.s32 %s16, 2
        // Predicated region
        $region69: #{tpu_custom_call.1} parent=67 // pred_check
          %p511 = pneg %p143
        $region70: #{tpu_custom_call.1} parent=67 // pred_check_branch
          %513 = sbr.rel (%p511) target = $region72
        $region71: #{tpu_custom_call.1} parent=67 // pred_region
          %s514 = sand.u32 %s128, 1
          %s515 = scalar_lea.sflag [#allocation6], %s514
          %s516 = sand.u32 %s128, 1
          %s517 = smul.addr %s516, 8
          %s518 = scalar_lea.vmem [#allocation10], %s517
          %519 = dma.done %s515, 128
        $region72: #{tpu_custom_call.1} parent=67 // pred_fallthru
          _
      $region68: #{tpu_custom_call.1} parent=5 // pred_fallthru
        _
    $region6: #{tpu_custom_call.1} parent=1 // loop_footer
      %s20 = sadd.s32 1, %s16
    $region7: #{tpu_custom_call.1} parent=1 // loop_footer_branch
      %15 = sbr.rel target = $region3
    $region8: #{tpu_custom_call.1} parent=1 // loop_exit
      _
    %520 = vsyncpa [#allocation5], 1
    %s521 = scalar_lea.sflag [#allocation5], 1
    %522 = vsyncpa %s521, 1
    %523 = vsyncpa [#allocation8], 1
    %s524 = scalar_lea.sflag [#allocation8], 1
    %525 = vsyncpa %s524, 1
    %526 = vsyncpa [#allocation6], 1
    %s527 = scalar_lea.sflag [#allocation6], 1
    %528 = vsyncpa %s527, 1

</llo_original>
